<compile_context>
chip_gen: v7x
topology: tpu7x:2x2x1
jax: 0.10.0
libtpu: 0.0.40
codegen_flags: <defaults>
</compile_context>

<pallas_src>
import jax
import jax.numpy as jnp
import numpy as np
from jax.experimental import pallas as pl
from jax.experimental.pallas import tpu as pltpu


# ----------------------------------------------------------------------------
# Pallas kernel: one batch element per grid step, everything lane-dense.
# ----------------------------------------------------------------------------
def resdblock_kernel(x_ref,                    # (1, H, W*Cin)
                     k1_ref, b1_ref,           # (3, W*Cin, W*Cout), (1, W*Cout)
                     k2_ref, b2_ref,           # (3, W*Cout, W*Cout), (1, W*Cout)
                     ksc_ref, bsc_ref,         # (W*Cin, W*Cout), (1, W*Cout)
                     out_ref,                  # (1, H, W*Cout)
                     s1_ref, s2_ref):          # VMEM (H+2, W*Cin), (H+2, W*Cout)
    H = x_ref.shape[1]
    x = x_ref[0]                               # (H, W*Cin)

    # Zero the halo rows every step (2 tiny rows per scratch).  Doing it every
    # step keeps the kernel correct when the "parallel" batch axis is sharded
    # across TensorCores (a core may never execute program_id == 0).
    z1 = jnp.zeros((1, s1_ref.shape[1]), s1_ref.dtype)
    s1_ref[0:1, :] = z1
    s1_ref[H + 1:H + 2, :] = z1

    # ---- stage 1: depthwise3x3 + pointwise1x1 + BN1 + ReLU, all folded into
    #      three banded matmuls (one per kernel row) + bias row. ----
    s1_ref[1:H + 1, :] = x
    t = (jnp.dot(s1_ref[0:H, :], k1_ref[0], preferred_element_type=jnp.float32) +
         jnp.dot(x,              k1_ref[1], preferred_element_type=jnp.float32) +
         jnp.dot(s1_ref[2:H + 2, :], k1_ref[2], preferred_element_type=jnp.float32) +
         b1_ref[...])
    t = jnp.maximum(t, 0.0)                    # (H, W*Cout)

    # ---- stage 2: depthwise3x3 + pointwise1x1 + BN2 (folded the same way) ----
    z2 = jnp.zeros((1, s2_ref.shape[1]), s2_ref.dtype)
    s2_ref[0:1, :] = z2
    s2_ref[H + 1:H + 2, :] = z2
    s2_ref[1:H + 1, :] = t
    xd = (jnp.dot(s2_ref[0:H, :], k2_ref[0], preferred_element_type=jnp.float32) +
          jnp.dot(t,              k2_ref[1], preferred_element_type=jnp.float32) +
          jnp.dot(s2_ref[2:H + 2, :], k2_ref[2], preferred_element_type=jnp.float32) +
          b2_ref[...])

    # ---- shortcut: 1x1 conv + BN folded into one block-diagonal matmul ----
    xr = jnp.dot(x, ksc_ref[...], preferred_element_type=jnp.float32) + bsc_ref[...]

    # ---- residual add + ReLU; (H, W*Cout) = (16, 128) -> dense lane store ----
    out_ref[0] = jnp.maximum(xd + xr, 0.0)


# ----------------------------------------------------------------------------
# Wrapper: pallas_call, grid over batch (parallel), lane-dense blocks.
# ----------------------------------------------------------------------------
def res_dblock_forward(x_nhwc, fp):
    N, H, W, Cin = x_nhwc.shape
    WCin = W * Cin
    WCout = fp["k1"].shape[2]
    Cout = WCout // W
    x_rows = x_nhwc.reshape(N, H, WCin)        # free row-major reshape

    out = pl.pallas_call(
        resdblock_kernel,
        out_shape=jax.ShapeDtypeStruct((N, H, WCout), jnp.float32),
        grid_spec=pltpu.PrefetchScalarGridSpec(
            num_scalar_prefetch=0,
            grid=(N,),
            in_specs=[
                pl.BlockSpec((1, H, WCin), lambda n: (n, 0, 0)),
                pl.BlockSpec((3, WCin, WCout), lambda n: (0, 0, 0)),
                pl.BlockSpec((1, WCout), lambda n: (0, 0)),
                pl.BlockSpec((3, WCout, WCout), lambda n: (0, 0, 0)),
                pl.BlockSpec((1, WCout), lambda n: (0, 0)),
                pl.BlockSpec((WCin, WCout), lambda n: (0, 0)),
                pl.BlockSpec((1, WCout), lambda n: (0, 0)),
            ],
            out_specs=pl.BlockSpec((1, H, WCout), lambda n: (n, 0, 0)),
            scratch_shapes=[pltpu.VMEM((H + 2, WCin), jnp.float32),
                            pltpu.VMEM((H + 2, WCout), jnp.float32)],
        ),
        compiler_params=pltpu.CompilerParams(
            dimension_semantics=("parallel",)),
    )(x_rows, fp["k1"], fp["b1"], fp["k2"], fp["b2"], fp["ksc"], fp["bsc"])

    return out.reshape(N, H, W, Cout)          # free reshape back to NHWC


# ----------------------------------------------------------------------------
# One-time parameter folding (numpy, outside the kernel / outside the hot path).
# ----------------------------------------------------------------------------
def _bn_fold(gamma, beta, mean, var, eps=1e-5):
    s = gamma / np.sqrt(var + eps)
    return s.astype(np.float32), (beta - mean * s).astype(np.float32)


def _banded_dwpw(dw, dwb, pw, pwb, bn_s, bn_c, W):
    """Fold depthwise3x3 (+bias) -> pointwise1x1 (+bias) -> BN(eval) into
    3 banded matrices K[ky] of shape (W*Ci, W*Co) + one bias row (1, W*Co).

    Row index = w'*Ci + i (input pixel within the row, channel i);
    Col index = w*Co + o  (output pixel within the row, channel o);
    K[ky][(w', i), (w, o)] = bn_s[o] * pw[o, i] * dw[i, ky, w'-w+1]  (|w'-w|<=1).
    """
    Ci = dw.shape[0]
    Co = pw.shape[0]
    A = pw * bn_s[:, None]                                  # (Co, Ci)
    K = np.zeros((3, W * Ci, W * Co), np.float32)
    for ky in range(3):
        for kx in range(3):
            B = A.T * dw[:, ky, kx][:, None]                # (Ci, Co)
            for w in range(W):
                wp = w + kx - 1
                if 0 <= wp < W:
                    K[ky, wp * Ci:(wp + 1) * Ci, w * Co:(w + 1) * Co] = B
    beta = bn_s * (pwb + pw @ dwb) + bn_c                   # (Co,)
    return K, np.tile(beta, W).reshape(1, W * Co).astype(np.float32)


def _blockdiag_pw(w, b, bn_s, bn_c, W):
    """Fold shortcut 1x1 conv (+bias) -> BN(eval) into one block-diagonal
    matrix (W*Ci, W*Co) + bias row."""
    Co, Ci = w.shape
    A = (w * bn_s[:, None]).T                               # (Ci, Co)
    M = np.zeros((W * Ci, W * Co), np.float32)
    for ww in range(W):
        M[ww * Ci:(ww + 1) * Ci, ww * Co:(ww + 1) * Co] = A
    beta = bn_s * b + bn_c
    return M, np.tile(beta, W).reshape(1, W * Co).astype(np.float32)


def fold_params(rp, W):
    g = lambda k: np.asarray(rp[k], np.float32)
    s1, c1 = _bn_fold(g("bn1_g"), g("bn1_b"), g("bn1_m"), g("bn1_v"))
    s2, c2 = _bn_fold(g("bn2_g"), g("bn2_b"), g("bn2_m"), g("bn2_v"))
    ss, cs = _bn_fold(g("bnsc_g"), g("bnsc_b"), g("bnsc_m"), g("bnsc_v"))
    k1, b1 = _banded_dwpw(g("dw1_w"), g("dw1_b"), g("pw1_w"), g("pw1_b"), s1, c1, W)
    k2, b2 = _banded_dwpw(g("dw2_w"), g("dw2_b"), g("pw2_w"), g("pw2_b"), s2, c2, W)
    ks, bs = _blockdiag_pw(g("sc_w"), g("sc_b"), ss, cs, W)
    return {"k1": jnp.asarray(k1), "b1": jnp.asarray(b1),
            "k2": jnp.asarray(k2), "b2": jnp.asarray(b2),
            "ksc": jnp.asarray(ks), "bsc": jnp.asarray(bs)}


# ----------------------------------------------------------------------------
# Deterministic raw parameters (PyTorch-shaped) + pure-JAX reference.
# ----------------------------------------------------------------------------
def make_raw_params(key, cin, cout):
    ks = jax.random.split(key, 22)
    std = 0.1
    nrm = lambda k, s: std * jax.random.normal(k, s, jnp.float32)
    rp = {}
    rp["dw1_w"] = nrm(ks[0], (cin, 3, 3));   rp["dw1_b"] = nrm(ks[1], (cin,))
    rp["pw1_w"] = nrm(ks[2], (cout, cin));   rp["pw1_b"] = nrm(ks[3], (cout,))
    rp["bn1_g"] = 1.0 + nrm(ks[4], (cout,)); rp["bn1_b"] = nrm(ks[5], (cout,))
    rp["bn1_m"] = nrm(ks[6], (cout,))
    rp["bn1_v"] = 1.0 + 0.5 * jnp.abs(jax.random.normal(ks[7], (cout,), jnp.float32))
    rp["dw2_w"] = nrm(ks[8], (cout, 3, 3));  rp["dw2_b"] = nrm(ks[9], (cout,))
    rp["pw2_w"] = nrm(ks[10], (cout, cout)); rp["pw2_b"] = nrm(ks[11], (cout,))
    rp["bn2_g"] = 1.0 + nrm(ks[12], (cout,)); rp["bn2_b"] = nrm(ks[13], (cout,))
    rp["bn2_m"] = nrm(ks[14], (cout,))
    rp["bn2_v"] = 1.0 + 0.5 * jnp.abs(jax.random.normal(ks[15], (cout,), jnp.float32))
    rp["sc_w"] = nrm(ks[16], (cout, cin));   rp["sc_b"] = nrm(ks[17], (cout,))
    rp["bnsc_g"] = 1.0 + nrm(ks[18], (cout,)); rp["bnsc_b"] = nrm(ks[19], (cout,))
    rp["bnsc_m"] = nrm(ks[20], (cout,))
    rp["bnsc_v"] = 1.0 + 0.5 * jnp.abs(jax.random.normal(ks[21], (cout,), jnp.float32))
    return rp


def ref_forward(x_nhwc, rp):
    """Pure-JAX reference mirroring the PyTorch forward with RAW (unfolded) params."""
    eps = 1e-5

    def dwconv(h, w, b):                        # w: (C,3,3), b: (C,)
        C = h.shape[-1]
        k = jnp.transpose(w, (1, 2, 0)).reshape(3, 3, 1, C)
        y = jax.lax.conv_general_dilated(
            h, k, (1, 1), "SAME",
            dimension_numbers=("NHWC", "HWIO", "NHWC"),
            feature_group_count=C)
        return y + b

    def pwconv(h, w, b):                        # w: (Co, Ci)
        return jnp.einsum("nhwc,oc->nhwo", h, w) + b

    def bnorm(h, g, bt, m, v):
        return (h - m) * (g / jnp.sqrt(v + eps)) + bt

    t = dwconv(x_nhwc, rp["dw1_w"], rp["dw1_b"])
    t = pwconv(t, rp["pw1_w"], rp["pw1_b"])
    t = jnp.maximum(bnorm(t, rp["bn1_g"], rp["bn1_b"], rp["bn1_m"], rp["bn1_v"]), 0.0)
    t = dwconv(t, rp["dw2_w"], rp["dw2_b"])
    t = pwconv(t, rp["pw2_w"], rp["pw2_b"])
    xd = bnorm(t, rp["bn2_g"], rp["bn2_b"], rp["bn2_m"], rp["bn2_v"])
    xr = bnorm(pwconv(x_nhwc, rp["sc_w"], rp["sc_b"]),
               rp["bnsc_g"], rp["bnsc_b"], rp["bnsc_m"], rp["bnsc_v"])
    return jnp.maximum(xd + xr, 0.0)


if __name__ == "__main__":
    N, Cin, Cout, H, W = 2, 4, 8, 16, 16
    key = jax.random.PRNGKey(0)
    kx, kp = jax.random.split(key)

    # PyTorch module takes NCHW; generate NCHW and convert to NHWC glue-side.
    x_nchw = jax.random.normal(kx, (N, Cin, H, W), jnp.float32)
    x_nhwc = jnp.transpose(x_nchw, (0, 2, 3, 1))

    raw = make_raw_params(kp, Cin, Cout)
    folded = fold_params(raw, W)                # one-time parameter transform

    out = res_dblock_forward(x_nhwc, folded)
    out = jax.block_until_ready(out)

    ref = jax.block_until_ready(ref_forward(x_nhwc, raw))
    np.testing.assert_allclose(np.asarray(out), np.asarray(ref),
                               rtol=1e-3, atol=1e-3)
    print("KERNEL_OK")
</pallas_src>

<mosaic_0001>
module attributes {stable_mosaic.version = 11 : i64} {
  func.func @resdblock_kernel(%arg0: i32, %arg1: memref<1x16x64xf32, #tpu.memory_space<vmem>>, %arg2: memref<3x64x128xf32, #tpu.memory_space<vmem>>, %arg3: memref<1x128xf32, #tpu.memory_space<vmem>>, %arg4: memref<3x128x128xf32, #tpu.memory_space<vmem>>, %arg5: memref<1x128xf32, #tpu.memory_space<vmem>>, %arg6: memref<64x128xf32, #tpu.memory_space<vmem>>, %arg7: memref<1x128xf32, #tpu.memory_space<vmem>>, %arg8: memref<1x16x128xf32, #tpu.memory_space<vmem>>, %arg9: memref<18x64xf32, #tpu.memory_space<vmem>>, %arg10: memref<18x128xf32, #tpu.memory_space<vmem>>) attributes {dimension_semantics = [#tpu.dimension_semantics<parallel>], iteration_bounds = array<i64: 2>, scalar_prefetch = 0 : i64, scratch_operands = 2 : i64, tpu.core_type = #tpu.core_type<tc>, window_params = [{transform_indices = @transform_0, window_bounds = array<i64: 1, 16, 64>}, {pipeline_mode = #tpu.pipeline_mode<synchronous>, transform_indices = @transform_1, window_bounds = array<i64: 3, 64, 128>}, {pipeline_mode = #tpu.pipeline_mode<synchronous>, transform_indices = @transform_2, window_bounds = array<i64: 1, 128>}, {pipeline_mode = #tpu.pipeline_mode<synchronous>, transform_indices = @transform_3, window_bounds = array<i64: 3, 128, 128>}, {pipeline_mode = #tpu.pipeline_mode<synchronous>, transform_indices = @transform_4, window_bounds = array<i64: 1, 128>}, {pipeline_mode = #tpu.pipeline_mode<synchronous>, transform_indices = @transform_5, window_bounds = array<i64: 64, 128>}, {pipeline_mode = #tpu.pipeline_mode<synchronous>, transform_indices = @transform_6, window_bounds = array<i64: 1, 128>}, {transform_indices = @transform_7, window_bounds = array<i64: 1, 16, 128>}]} {
    %c0 = arith.constant 0 : index
    %c0_0 = arith.constant 0 : index
    %c0_1 = arith.constant 0 : index
    %0 = vector.load %arg1[%c0, %c0_0, %c0_1] : memref<1x16x64xf32, #tpu.memory_space<vmem>>, vector<1x16x64xf32>
    %1 = vector.shape_cast %0 : vector<1x16x64xf32> to vector<16x64xf32>
    %cst = arith.constant 0.000000e+00 : f32
    %2 = vector.broadcast %cst : f32 to vector<1x64xf32>
    %c0_2 = arith.constant 0 : index
    %c0_3 = arith.constant 0 : index
    %3 = vector.load %arg9[%c0_2, %c0_3] : memref<18x64xf32, #tpu.memory_space<vmem>>, vector<1x64xf32>
    tpu.vector_store %arg9[%c0_2, %c0_3], %2 {strides = array<i32>} : memref<18x64xf32, #tpu.memory_space<vmem>>, vector<1x64xf32>,
    %c17 = arith.constant 17 : index
    %c0_4 = arith.constant 0 : index
    %4 = vector.load %arg9[%c17, %c0_4] : memref<18x64xf32, #tpu.memory_space<vmem>>, vector<1x64xf32>
    tpu.vector_store %arg9[%c17, %c0_4], %2 {strides = array<i32>} : memref<18x64xf32, #tpu.memory_space<vmem>>, vector<1x64xf32>,
    %c1 = arith.constant 1 : index
    %c0_5 = arith.constant 0 : index
    %5 = vector.load %arg9[%c1, %c0_5] : memref<18x64xf32, #tpu.memory_space<vmem>>, vector<16x64xf32>
    tpu.vector_store %arg9[%c1, %c0_5], %1 {strides = array<i32>} : memref<18x64xf32, #tpu.memory_space<vmem>>, vector<16x64xf32>,
    %c0_6 = arith.constant 0 : index
    %c0_7 = arith.constant 0 : index
    %6 = vector.load %arg9[%c0_6, %c0_7] : memref<18x64xf32, #tpu.memory_space<vmem>>, vector<16x64xf32>
    %c0_8 = arith.constant 0 : index
    %c0_9 = arith.constant 0 : index
    %c0_10 = arith.constant 0 : index
    %7 = vector.load %arg2[%c0_8, %c0_9, %c0_10] : memref<3x64x128xf32, #tpu.memory_space<vmem>>, vector<1x64x128xf32>
    %8 = vector.shape_cast %7 : vector<1x64x128xf32> to vector<64x128xf32>
    %cst_11 = arith.constant dense<0.000000e+00> : vector<16x128xf32>
    %9 = tpu.matmul %6, %8, %cst_11 {dimension_numbers = #tpu.dot_dimension_numbers<[1], [0], [0], [1], [0, 0, 1, 1], [], []>} : vector<16x64xf32>, vector<64x128xf32>, vector<16x128xf32> -> vector<16x128xf32>
    %c1_12 = arith.constant 1 : index
    %c0_13 = arith.constant 0 : index
    %c0_14 = arith.constant 0 : index
    %10 = vector.load %arg2[%c1_12, %c0_13, %c0_14] : memref<3x64x128xf32, #tpu.memory_space<vmem>>, vector<1x64x128xf32>
    %11 = vector.shape_cast %10 : vector<1x64x128xf32> to vector<64x128xf32>
    %cst_15 = arith.constant dense<0.000000e+00> : vector<16x128xf32>
    %12 = tpu.matmul %1, %11, %cst_15 {dimension_numbers = #tpu.dot_dimension_numbers<[1], [0], [0], [1], [0, 0, 1, 1], [], []>} : vector<16x64xf32>, vector<64x128xf32>, vector<16x128xf32> -> vector<16x128xf32>
    %13 = arith.addf %9, %12 : vector<16x128xf32>
    %c2 = arith.constant 2 : index
    %c0_16 = arith.constant 0 : index
    %14 = vector.load %arg9[%c2, %c0_16] : memref<18x64xf32, #tpu.memory_space<vmem>>, vector<16x64xf32>
    %c2_17 = arith.constant 2 : index
    %c0_18 = arith.constant 0 : index
    %c0_19 = arith.constant 0 : index
    %15 = vector.load %arg2[%c2_17, %c0_18, %c0_19] : memref<3x64x128xf32, #tpu.memory_space<vmem>>, vector<1x64x128xf32>
    %16 = vector.shape_cast %15 : vector<1x64x128xf32> to vector<64x128xf32>
    %cst_20 = arith.constant dense<0.000000e+00> : vector<16x128xf32>
    %17 = tpu.matmul %14, %16, %cst_20 {dimension_numbers = #tpu.dot_dimension_numbers<[1], [0], [0], [1], [0, 0, 1, 1], [], []>} : vector<16x64xf32>, vector<64x128xf32>, vector<16x128xf32> -> vector<16x128xf32>
    %18 = arith.addf %13, %17 : vector<16x128xf32>
    %c0_21 = arith.constant 0 : index
    %c0_22 = arith.constant 0 : index
    %19 = vector.load %arg3[%c0_21, %c0_22] : memref<1x128xf32, #tpu.memory_space<vmem>>, vector<1x128xf32>
    %20 = vector.broadcast %19 : vector<1x128xf32> to vector<16x128xf32>
    %21 = arith.addf %18, %20 : vector<16x128xf32>
    %cst_23 = arith.constant 0.000000e+00 : f32
    %22 = vector.broadcast %cst_23 : f32 to vector<16x128xf32>
    %23 = arith.maximumf %21, %22 : vector<16x128xf32>
    %cst_24 = arith.constant 0.000000e+00 : f32
    %24 = vector.broadcast %cst_24 : f32 to vector<1x128xf32>
    %c0_25 = arith.constant 0 : index
    %c0_26 = arith.constant 0 : index
    %25 = vector.load %arg10[%c0_25, %c0_26] : memref<18x128xf32, #tpu.memory_space<vmem>>, vector<1x128xf32>
    tpu.vector_store %arg10[%c0_25, %c0_26], %24 {strides = array<i32>} : memref<18x128xf32, #tpu.memory_space<vmem>>, vector<1x128xf32>,
    %c17_27 = arith.constant 17 : index
    %c0_28 = arith.constant 0 : index
    %26 = vector.load %arg10[%c17_27, %c0_28] : memref<18x128xf32, #tpu.memory_space<vmem>>, vector<1x128xf32>
    tpu.vector_store %arg10[%c17_27, %c0_28], %24 {strides = array<i32>} : memref<18x128xf32, #tpu.memory_space<vmem>>, vector<1x128xf32>,
    %c1_29 = arith.constant 1 : index
    %c0_30 = arith.constant 0 : index
    %27 = vector.load %arg10[%c1_29, %c0_30] : memref<18x128xf32, #tpu.memory_space<vmem>>, vector<16x128xf32>
    tpu.vector_store %arg10[%c1_29, %c0_30], %23 {strides = array<i32>} : memref<18x128xf32, #tpu.memory_space<vmem>>, vector<16x128xf32>,
    %c0_31 = arith.constant 0 : index
    %c0_32 = arith.constant 0 : index
    %28 = vector.load %arg10[%c0_31, %c0_32] : memref<18x128xf32, #tpu.memory_space<vmem>>, vector<16x128xf32>
    %c0_33 = arith.constant 0 : index
    %c0_34 = arith.constant 0 : index
    %c0_35 = arith.constant 0 : index
    %29 = vector.load %arg4[%c0_33, %c0_34, %c0_35] : memref<3x128x128xf32, #tpu.memory_space<vmem>>, vector<1x128x128xf32>
    %30 = vector.shape_cast %29 : vector<1x128x128xf32> to vector<128x128xf32>
    %cst_36 = arith.constant dense<0.000000e+00> : vector<16x128xf32>
    %31 = tpu.matmul %28, %30, %cst_36 {dimension_numbers = #tpu.dot_dimension_numbers<[1], [0], [0], [1], [0, 0, 1, 1], [], []>} : vector<16x128xf32>, vector<128x128xf32>, vector<16x128xf32> -> vector<16x128xf32>
    %c1_37 = arith.constant 1 : index
    %c0_38 = arith.constant 0 : index
    %c0_39 = arith.constant 0 : index
    %32 = vector.load %arg4[%c1_37, %c0_38, %c0_39] : memref<3x128x128xf32, #tpu.memory_space<vmem>>, vector<1x128x128xf32>
    %33 = vector.shape_cast %32 : vector<1x128x128xf32> to vector<128x128xf32>
    %cst_40 = arith.constant dense<0.000000e+00> : vector<16x128xf32>
    %34 = tpu.matmul %23, %33, %cst_40 {dimension_numbers = #tpu.dot_dimension_numbers<[1], [0], [0], [1], [0, 0, 1, 1], [], []>} : vector<16x128xf32>, vector<128x128xf32>, vector<16x128xf32> -> vector<16x128xf32>
    %35 = arith.addf %31, %34 : vector<16x128xf32>
    %c2_41 = arith.constant 2 : index
    %c0_42 = arith.constant 0 : index
    %36 = vector.load %arg10[%c2_41, %c0_42] : memref<18x128xf32, #tpu.memory_space<vmem>>, vector<16x128xf32>
    %c2_43 = arith.constant 2 : index
    %c0_44 = arith.constant 0 : index
    %c0_45 = arith.constant 0 : index
    %37 = vector.load %arg4[%c2_43, %c0_44, %c0_45] : memref<3x128x128xf32, #tpu.memory_space<vmem>>, vector<1x128x128xf32>
    %38 = vector.shape_cast %37 : vector<1x128x128xf32> to vector<128x128xf32>
    %cst_46 = arith.constant dense<0.000000e+00> : vector<16x128xf32>
    %39 = tpu.matmul %36, %38, %cst_46 {dimension_numbers = #tpu.dot_dimension_numbers<[1], [0], [0], [1], [0, 0, 1, 1], [], []>} : vector<16x128xf32>, vector<128x128xf32>, vector<16x128xf32> -> vector<16x128xf32>
    %40 = arith.addf %35, %39 : vector<16x128xf32>
    %c0_47 = arith.constant 0 : index
    %c0_48 = arith.constant 0 : index
    %41 = vector.load %arg5[%c0_47, %c0_48] : memref<1x128xf32, #tpu.memory_space<vmem>>, vector<1x128xf32>
    %42 = vector.broadcast %41 : vector<1x128xf32> to vector<16x128xf32>
    %43 = arith.addf %40, %42 : vector<16x128xf32>
    %c0_49 = arith.constant 0 : index
    %c0_50 = arith.constant 0 : index
    %44 = vector.load %arg6[%c0_49, %c0_50] : memref<64x128xf32, #tpu.memory_space<vmem>>, vector<64x128xf32>
    %cst_51 = arith.constant dense<0.000000e+00> : vector<16x128xf32>
    %45 = tpu.matmul %1, %44, %cst_51 {dimension_numbers = #tpu.dot_dimension_numbers<[1], [0], [0], [1], [0, 0, 1, 1], [], []>} : vector<16x64xf32>, vector<64x128xf32>, vector<16x128xf32> -> vector<16x128xf32>
    %c0_52 = arith.constant 0 : index
    %c0_53 = arith.constant 0 : index
    %46 = vector.load %arg7[%c0_52, %c0_53] : memref<1x128xf32, #tpu.memory_space<vmem>>, vector<1x128xf32>
    %47 = vector.broadcast %46 : vector<1x128xf32> to vector<16x128xf32>
    %48 = arith.addf %45, %47 : vector<16x128xf32>
    %49 = arith.addf %43, %48 : vector<16x128xf32>
    %cst_54 = arith.constant 0.000000e+00 : f32
    %50 = vector.broadcast %cst_54 : f32 to vector<16x128xf32>
    %51 = arith.maximumf %49, %50 : vector<16x128xf32>
    %c0_55 = arith.constant 0 : index
    %c0_56 = arith.constant 0 : index
    %c0_57 = arith.constant 0 : index
    %52 = vector.load %arg8[%c0_55, %c0_56, %c0_57] : memref<1x16x128xf32, #tpu.memory_space<vmem>>, vector<1x16x128xf32>
    %53 = vector.shape_cast %52 : vector<1x16x128xf32> to vector<16x128xf32>
    %54 = vector.shape_cast %51 : vector<16x128xf32> to vector<1x16x128xf32>
    tpu.vector_store %arg8[%c0_55, %c0_56, %c0_57], %54 {strides = array<i32>} : memref<1x16x128xf32, #tpu.memory_space<vmem>>, vector<1x16x128xf32>,
    return
  }
  func.func @transform_0(%arg0: i32) -> (i32, i32, i32) {
    %c0_i32 = arith.constant 0 : i32
    %c0_i32_0 = arith.constant 0 : i32
    %c0_i32_1 = arith.constant 0 : i32
    return %arg0, %c0_i32, %c0_i32_0 : i32, i32, i32
  }
  func.func @transform_1(%arg0: i32) -> (i32, i32, i32) {
    %c0_i32 = arith.constant 0 : i32
    %c0_i32_0 = arith.constant 0 : i32
    %c0_i32_1 = arith.constant 0 : i32
    %c0_i32_2 = arith.constant 0 : i32
    return %c0_i32, %c0_i32_0, %c0_i32_1 : i32, i32, i32
  }
  func.func @transform_2(%arg0: i32) -> (i32, i32) {
    %c0_i32 = arith.constant 0 : i32
    %c0_i32_0 = arith.constant 0 : i32
    %c0_i32_1 = arith.constant 0 : i32
    return %c0_i32, %c0_i32_0 : i32, i32
  }
  func.func @transform_3(%arg0: i32) -> (i32, i32, i32) {
    %c0_i32 = arith.constant 0 : i32
    %c0_i32_0 = arith.constant 0 : i32
    %c0_i32_1 = arith.constant 0 : i32
    %c0_i32_2 = arith.constant 0 : i32
    return %c0_i32, %c0_i32_0, %c0_i32_1 : i32, i32, i32
  }
  func.func @transform_4(%arg0: i32) -> (i32, i32) {
    %c0_i32 = arith.constant 0 : i32
    %c0_i32_0 = arith.constant 0 : i32
    %c0_i32_1 = arith.constant 0 : i32
    return %c0_i32, %c0_i32_0 : i32, i32
  }
  func.func @transform_5(%arg0: i32) -> (i32, i32) {
    %c0_i32 = arith.constant 0 : i32
    %c0_i32_0 = arith.constant 0 : i32
    %c0_i32_1 = arith.constant 0 : i32
    return %c0_i32, %c0_i32_0 : i32, i32
  }
  func.func @transform_6(%arg0: i32) -> (i32, i32) {
    %c0_i32 = arith.constant 0 : i32
    %c0_i32_0 = arith.constant 0 : i32
    %c0_i32_1 = arith.constant 0 : i32
    return %c0_i32, %c0_i32_0 : i32, i32
  }
  func.func @transform_7(%arg0: i32) -> (i32, i32, i32) {
    %c0_i32 = arith.constant 0 : i32
    %c0_i32_0 = arith.constant 0 : i32
    %c0_i32_1 = arith.constant 0 : i32
    return %arg0, %c0_i32, %c0_i32_0 : i32, i32, i32
  }
}

</mosaic_0001>

<llo_original>
// kernel: tpu_custom_call.1
$region0: #{tpu_custom_call.1}
  #allocation0 [shape = 'u32[]', space=smem, size = 0x4, offset = 0x4, fixed_abs, tag = 'smem constant byte address 0x4 - core index']
  #allocation1 [shape = 'u32[144,128]{1,0:T(1,128)}', space=vmem, size = 0x12000, scoped, tag = 'internal scratch']
  #allocation2 [shape = 'f32[18,64]{1,0:T(8,128)}', space=vmem, size = 0x3000, scoped, tag = 'scratch operand']
  #allocation3 [shape = 'f32[18,128]{1,0:T(8,128)}', space=vmem, size = 0x3000, scoped, tag = 'scratch operand']
  %s0 = inlined_call_operand.hbm [shape: f32[2,16,64], index: 0, kind: input, shape index: {}]
  %s1 = inlined_call_operand.hbm [shape: f32[3,64,128], index: 1, kind: input, shape index: {}]
  %s2 = inlined_call_operand.vmem [shape: f32[1,128], index: 2, kind: input, shape index: {}]
  %s3 = inlined_call_operand.hbm [shape: f32[3,128,128], index: 3, kind: input, shape index: {}]
  %s4 = inlined_call_operand.vmem [shape: f32[1,128], index: 4, kind: input, shape index: {}]
  %s5 = inlined_call_operand.hbm [shape: f32[64,128], index: 5, kind: input, shape index: {}]
  %s6 = inlined_call_operand.vmem [shape: f32[1,128], index: 6, kind: input, shape index: {}]
  %s7 = inlined_call_operand.hbm [shape: f32[2,16,128], index: 7, kind: output, shape index: {}]
  %s8 = sld [smem:[#allocation0]]
  $region77: #{tpu_custom_call.1} parent=0
    _
  %s10 = ssub.s32 1, %s8
  %s11 = scalar_select 0, %s10, %s8
  $region1: #{tpu_custom_call.1} parent=0
    #allocation4 [shape = 'u8[16384]{0}', space=vmem, size = 0x4000, scoped, tag = 'input window, operand 0']
    #allocation5 [shape = 's32[2]{0}', space=sflag, size = 0x8, scoped, tag = 'scoped memory for tpu_custom_call.1']
    #allocation6 [shape = 's32[2]{0}', space=sflag, size = 0x8, scoped, tag = 'scoped memory for tpu_custom_call.1']
    #allocation7 [shape = 'u8[98304]{0}', space=vmem, size = 0x18000, scoped, tag = 'input window, operand 1, single buffered']
    #allocation8 [shape = 's32[1]{0}', space=sflag, size = 0x4, scoped, tag = 'scoped memory for tpu_custom_call.1']
    #allocation9 [shape = 'u8[196608]{0}', space=vmem, size = 0x30000, scoped, tag = 'input window, operand 3, single buffered']
    #allocation10 [shape = 'u8[32768]{0}', space=vmem, size = 0x8000, scoped, tag = 'input window, operand 5, single buffered']
    #allocation11 [shape = 's32[1]{0}', space=sflag, size = 0x4, scoped, tag = 'scoped memory for tpu_custom_call.1']
    #allocation12 [shape = 'u8[16384]{0}', space=vmem, size = 0x4000, scoped, tag = 'output window, operand 0']
    %12 = vsyncpa [#allocation5], 0
    %s13 = scalar_lea.sflag [#allocation5], 1
    %14 = vsyncpa %s13, 0
    %15 = vsyncpa [#allocation8], 0
    %16 = vsyncpa [#allocation11], 0
    %17 = vsyncpa [#allocation6], 0
    %s18 = scalar_lea.sflag [#allocation6], 1
    %19 = vsyncpa %s18, 0
    loop: start=0, step=1, limit=4
    $region2: #{tpu_custom_call.1} parent=1 // loop_pre_header
      _
    $region3: #{tpu_custom_call.1} parent=1 // loop_header
      %s21 = sphi 0, %s25
      %p22 = scmp.ge.s32.totalorder %s21, 4
      %s31 = sphi 0, %s33
      %s34 = sphi 0, %s31
      %s35 = sphi 0, %s34
      %s51 = sphi 0, %s35
      %s55 = sphi 0, %s55
      %s57 = sphi 0, %s55
      %s58 = sphi 0, %s57
      %s72 = sphi 0, %s58
      %s76 = sphi 0, %s76
      %s78 = sphi 0, %s76
      %s79 = sphi 0, %s78
      %s93 = sphi 0, %s79
      %s97 = sphi 0, %s97
      %s99 = sphi 0, %s97
      %s100 = sphi 0, %s99
      %s114 = sphi 0, %s100
      %s118 = sphi 0, %s118
      %s120 = sphi 0, %s118
      %s121 = sphi 0, %s120
      %s135 = sphi 0, %s121
      %s139 = sphi 0, %s139
      %s141 = sphi 0, %s139
      %s142 = sphi 0, %s141
      %s156 = sphi 0, %s142
      %s160 = sphi 0, %s160
      %s162 = sphi 0, %s160
      %s163 = sphi 0, %s162
      %s177 = sphi 0, %s163
      %s183 = sphi 0, %s185
      %s186 = sphi 0, %s183
      %s187 = sphi 0, %s186
      %s203 = sphi 0, %s187
    $region4: #{tpu_custom_call.1} parent=1 // loop_header_branch
      %24 = sbr.rel (%p22) target = $region8
    $region5: #{tpu_custom_call.1} parent=1 // loop_body
      %s26 = ssub.s32 %s21, 1
      %s27 = ssub.s32 %s21, 2
      %s28 = sadd.s32 %s21, 1
      %s29 = ssub.s32 %s21, %s28
      %p30 = scmp.eq.s32.totalorder %s29, 0
      %s32 = sadd.s32 %s31, 1
      %s33 = scalar_select %p30, %s31, %s32
      %p36 = pneg %p30
      %p37 = scmp.eq.s32.totalorder %s21, 1
      %p38 = por %p36, %p37
      %p39 = scmp.ne.s32.totalorder %s31, %s34
      %p40 = scmp.eq.s32.totalorder %s21, 0
      %p41 = por %p39, %p40
      %p42 = scmp.ne.s32.totalorder %s31, %s34
      %p43 = scmp.eq.s32.totalorder %s26, 1
      %p44 = por %p42, %p43
      %p45 = scmp.ne.s32.totalorder %s34, %s35
      %p46 = scmp.eq.s32.totalorder %s26, 0
      %p47 = por %p45, %p46
      %p48 = scmp.ne.s32.totalorder %s34, %s35
      %p49 = scmp.eq.s32.totalorder %s27, 1
      %p50 = por %p48, %p49
      %p52 = scmp.ne.s32.totalorder %s35, %s51
      %p53 = scmp.eq.s32.totalorder %s27, 0
      %p54 = por %p52, %p53
      %s56 = sadd.s32 %s55, 1
      %p59 = scmp.eq.s32.totalorder %s21, 1
      %p60 = scmp.ne.s32.totalorder %s55, %s57
      %p61 = scmp.eq.s32.totalorder %s21, 0
      %p62 = por %p60, %p61
      %p63 = scmp.ne.s32.totalorder %s55, %s57
      %p64 = scmp.eq.s32.totalorder %s26, 1
      %p65 = por %p63, %p64
      %p66 = scmp.ne.s32.totalorder %s57, %s58
      %p67 = scmp.eq.s32.totalorder %s26, 0
      %p68 = por %p66, %p67
      %p69 = scmp.ne.s32.totalorder %s57, %s58
      %p70 = scmp.eq.s32.totalorder %s27, 1
      %p71 = por %p69, %p70
      %p73 = scmp.ne.s32.totalorder %s58, %s72
      %p74 = scmp.eq.s32.totalorder %s27, 0
      %p75 = por %p73, %p74
      %s77 = sadd.s32 %s76, 1
      %p80 = scmp.eq.s32.totalorder %s21, 1
      %p81 = scmp.ne.s32.totalorder %s76, %s78
      %p82 = scmp.eq.s32.totalorder %s21, 0
      %p83 = por %p81, %p82
      %p84 = scmp.ne.s32.totalorder %s76, %s78
      %p85 = scmp.eq.s32.totalorder %s26, 1
      %p86 = por %p84, %p85
      %p87 = scmp.ne.s32.totalorder %s78, %s79
      %p88 = scmp.eq.s32.totalorder %s26, 0
      %p89 = por %p87, %p88
      %p90 = scmp.ne.s32.totalorder %s78, %s79
      %p91 = scmp.eq.s32.totalorder %s27, 1
      %p92 = por %p90, %p91
      %p94 = scmp.ne.s32.totalorder %s79, %s93
      %p95 = scmp.eq.s32.totalorder %s27, 0
      %p96 = por %p94, %p95
      %s98 = sadd.s32 %s97, 1
      %p101 = scmp.eq.s32.totalorder %s21, 1
      %p102 = scmp.ne.s32.totalorder %s97, %s99
      %p103 = scmp.eq.s32.totalorder %s21, 0
      %p104 = por %p102, %p103
      %p105 = scmp.ne.s32.totalorder %s97, %s99
      %p106 = scmp.eq.s32.totalorder %s26, 1
      %p107 = por %p105, %p106
      %p108 = scmp.ne.s32.totalorder %s99, %s100
      %p109 = scmp.eq.s32.totalorder %s26, 0
      %p110 = por %p108, %p109
      %p111 = scmp.ne.s32.totalorder %s99, %s100
      %p112 = scmp.eq.s32.totalorder %s27, 1
      %p113 = por %p111, %p112
      %p115 = scmp.ne.s32.totalorder %s100, %s114
      %p116 = scmp.eq.s32.totalorder %s27, 0
      %p117 = por %p115, %p116
      %s119 = sadd.s32 %s118, 1
      %p122 = scmp.eq.s32.totalorder %s21, 1
      %p123 = scmp.ne.s32.totalorder %s118, %s120
      %p124 = scmp.eq.s32.totalorder %s21, 0
      %p125 = por %p123, %p124
      %p126 = scmp.ne.s32.totalorder %s118, %s120
      %p127 = scmp.eq.s32.totalorder %s26, 1
      %p128 = por %p126, %p127
      %p129 = scmp.ne.s32.totalorder %s120, %s121
      %p130 = scmp.eq.s32.totalorder %s26, 0
      %p131 = por %p129, %p130
      %p132 = scmp.ne.s32.totalorder %s120, %s121
      %p133 = scmp.eq.s32.totalorder %s27, 1
      %p134 = por %p132, %p133
      %p136 = scmp.ne.s32.totalorder %s121, %s135
      %p137 = scmp.eq.s32.totalorder %s27, 0
      %p138 = por %p136, %p137
      %s140 = sadd.s32 %s139, 1
      %p143 = scmp.eq.s32.totalorder %s21, 1
      %p144 = scmp.ne.s32.totalorder %s139, %s141
      %p145 = scmp.eq.s32.totalorder %s21, 0
      %p146 = por %p144, %p145
      %p147 = scmp.ne.s32.totalorder %s139, %s141
      %p148 = scmp.eq.s32.totalorder %s26, 1
      %p149 = por %p147, %p148
      %p150 = scmp.ne.s32.totalorder %s141, %s142
      %p151 = scmp.eq.s32.totalorder %s26, 0
      %p152 = por %p150, %p151
      %p153 = scmp.ne.s32.totalorder %s141, %s142
      %p154 = scmp.eq.s32.totalorder %s27, 1
      %p155 = por %p153, %p154
      %p157 = scmp.ne.s32.totalorder %s142, %s156
      %p158 = scmp.eq.s32.totalorder %s27, 0
      %p159 = por %p157, %p158
      %s161 = sadd.s32 %s160, 1
      %p164 = scmp.eq.s32.totalorder %s21, 1
      %p165 = scmp.ne.s32.totalorder %s160, %s162
      %p166 = scmp.eq.s32.totalorder %s21, 0
      %p167 = por %p165, %p166
      %p168 = scmp.ne.s32.totalorder %s160, %s162
      %p169 = scmp.eq.s32.totalorder %s26, 1
      %p170 = por %p168, %p169
      %p171 = scmp.ne.s32.totalorder %s162, %s163
      %p172 = scmp.eq.s32.totalorder %s26, 0
      %p173 = por %p171, %p172
      %p174 = scmp.ne.s32.totalorder %s162, %s163
      %p175 = scmp.eq.s32.totalorder %s27, 1
      %p176 = por %p174, %p175
      %p178 = scmp.ne.s32.totalorder %s163, %s177
      %p179 = scmp.eq.s32.totalorder %s27, 0
      %p180 = por %p178, %p179
      %s181 = ssub.s32 %s21, %s28
      %p182 = scmp.eq.s32.totalorder %s181, 0
      %s184 = sadd.s32 %s183, 1
      %s185 = scalar_select %p182, %s183, %s184
      %p188 = pneg %p182
      %p189 = scmp.eq.s32.totalorder %s21, 1
      %p190 = por %p188, %p189
      %p191 = scmp.ne.s32.totalorder %s183, %s186
      %p192 = scmp.eq.s32.totalorder %s21, 0
      %p193 = por %p191, %p192
      %p194 = scmp.ne.s32.totalorder %s183, %s186
      %p195 = scmp.eq.s32.totalorder %s26, 1
      %p196 = por %p194, %p195
      %p197 = scmp.ne.s32.totalorder %s186, %s187
      %p198 = scmp.eq.s32.totalorder %s26, 0
      %p199 = por %p197, %p198
      %p200 = scmp.ne.s32.totalorder %s186, %s187
      %p201 = scmp.eq.s32.totalorder %s27, 1
      %p202 = por %p200, %p201
      %p204 = scmp.ne.s32.totalorder %s187, %s203
      %p205 = scmp.eq.s32.totalorder %s27, 0
      %p206 = por %p204, %p205
      %p207 = scmp.le.s32.totalorder 1, %s21
      %p208 = scmp.lt.s32.totalorder %s21, 3
      %p209 = pnand %p207, %p208
      %p210 = pneg %p209
      // Predicated region
      $region9: #{tpu_custom_call.1} parent=5 // pred_check
        _
      $region10: #{tpu_custom_call.1} parent=5 // pred_check_branch
        %212 = sbr.rel (%p209) target = $region12
      $region11: #{tpu_custom_call.1} parent=5 // pred_region
        %s213 = ssub.s32 %s21, 1
        // Predicated region
        $region13: #{tpu_custom_call.1} parent=11 // pred_check
          %p214 = pneg %p68
        $region14: #{tpu_custom_call.1} parent=11 // pred_check_branch
          %216 = sbr.rel (%p214) target = $region16
        $region15: #{tpu_custom_call.1} parent=11 // pred_region
          %s218 = ssub.s32 3072, 3072
          %219 = vsyncadd [#allocation8], %s218
          %s220 = sshll.u32 [#allocation7], 4
          %s221 = int_to_ptr.vmem [resolvable:$true] %s220
          %226 = dma.hbm_to_vmem [thread:$0]  %s1, 3072, %s221, [#allocation8], 128, 128, 8
        $region16: #{tpu_custom_call.1} parent=11 // pred_fallthru
          _
        // Predicated region
        $region17: #{tpu_custom_call.1} parent=11 // pred_check
          %p227 = pneg %p89
        $region18: #{tpu_custom_call.1} parent=11 // pred_check_branch
          %229 = sbr.rel (%p227) target = $region20
        $region19: #{tpu_custom_call.1} parent=11 // pred_region
          _
        $region20: #{tpu_custom_call.1} parent=11 // pred_fallthru
          _
        // Predicated region
        $region21: #{tpu_custom_call.1} parent=11 // pred_check
          %p230 = pneg %p110
        $region22: #{tpu_custom_call.1} parent=11 // pred_check_branch
          %232 = sbr.rel (%p230) target = $region24
        $region23: #{tpu_custom_call.1} parent=11 // pred_region
          %s234 = ssub.s32 6144, 6144
          %235 = vsyncadd [#allocation8], %s234
          %s236 = sshll.u32 [#allocation9], 4
          %s237 = int_to_ptr.vmem [resolvable:$true] %s236
          %242 = dma.hbm_to_vmem [thread:$0]  %s3, 6144, %s237, [#allocation8], 128, 128, 8
        $region24: #{tpu_custom_call.1} parent=11 // pred_fallthru
          _
        // Predicated region
        $region25: #{tpu_custom_call.1} parent=11 // pred_check
          %p243 = pneg %p131
        $region26: #{tpu_custom_call.1} parent=11 // pred_check_branch
          %245 = sbr.rel (%p243) target = $region28
        $region27: #{tpu_custom_call.1} parent=11 // pred_region
          _
        $region28: #{tpu_custom_call.1} parent=11 // pred_fallthru
          _
        // Predicated region
        $region29: #{tpu_custom_call.1} parent=11 // pred_check
          %p246 = pneg %p152
        $region30: #{tpu_custom_call.1} parent=11 // pred_check_branch
          %248 = sbr.rel (%p246) target = $region32
        $region31: #{tpu_custom_call.1} parent=11 // pred_region
          %s250 = ssub.s32 1024, 1024
          %251 = vsyncadd [#allocation11], %s250
          %s252 = sshll.u32 [#allocation10], 4
          %s253 = int_to_ptr.vmem [resolvable:$true] %s252
          %258 = dma.hbm_to_vmem [thread:$0]  %s5, 1024, %s253, [#allocation11], 128, 128, 8
        $region32: #{tpu_custom_call.1} parent=11 // pred_fallthru
          _
        // Predicated region
        $region33: #{tpu_custom_call.1} parent=11 // pred_check
          %p259 = pneg %p173
        $region34: #{tpu_custom_call.1} parent=11 // pred_check_branch
          %261 = sbr.rel (%p259) target = $region36
        $region35: #{tpu_custom_call.1} parent=11 // pred_region
          _
        $region36: #{tpu_custom_call.1} parent=11 // pred_fallthru
          _
      $region12: #{tpu_custom_call.1} parent=5 // pred_fallthru
        _
      %p262 = scmp.lt.s32.totalorder %s21, 2
      // Predicated region
      $region37: #{tpu_custom_call.1} parent=5 // pred_check
        %p263 = pneg %p262
      $region38: #{tpu_custom_call.1} parent=5 // pred_check_branch
        %265 = sbr.rel (%p263) target = $region40
      $region39: #{tpu_custom_call.1} parent=5 // pred_region
        // Predicated region
        $region41: #{tpu_custom_call.1} parent=39 // pred_check
          %p266 = pneg %p41
        $region42: #{tpu_custom_call.1} parent=39 // pred_check_branch
          %268 = sbr.rel (%p266) target = $region44
        $region43: #{tpu_custom_call.1} parent=39 // pred_region
          %s269 = sand.u32 %s31, 1
          %s270 = scalar_lea.sflag [#allocation5], %s269
          %s271 = sand.u32 %s31, 1
          %s272 = smul.addr %s271, 16
          %s273 = scalar_lea.vmem [#allocation4], %s272
          %s275 = ssub.s32 256, 256
          %276 = vsyncadd %s270, %s275
          %s277 = smul.addr %s21, 2
          %s278 = smul.addr %s277, 128
          %s279 = scalar_lea.hbm %s0, %s278
          %s280 = sshll.u32 %s273, 4
          %s281 = int_to_ptr.vmem [resolvable:$true] %s280
          %286 = dma.hbm_to_vmem [thread:$0]  %s279, 256, %s281, %s270, 128, 128, 8
        $region44: #{tpu_custom_call.1} parent=39 // pred_fallthru
          _
      $region40: #{tpu_custom_call.1} parent=5 // pred_fallthru
        _
      %p287 = scmp.le.s32.totalorder 1, %s21
      %p288 = scmp.lt.s32.totalorder %s21, 3
      %p289 = pnand %p287, %p288
      %p290 = pneg %p289
      // Predicated region
      $region45: #{tpu_custom_call.1} parent=5 // pred_check
        _
      $region46: #{tpu_custom_call.1} parent=5 // pred_check_branch
        %292 = sbr.rel (%p289) target = $region48
      $region47: #{tpu_custom_call.1} parent=5 // pred_region
        %s293 = ssub.s32 %s21, 1
        %s294 = sand.u32 %s34, 1
        %s295 = scalar_lea.sflag [#allocation5], %s294
        %s296 = sand.u32 %s34, 1
        %s297 = smul.addr %s296, 16
        %s298 = scalar_lea.vmem [#allocation4], %s297
        // Predicated region
        $region49: #{tpu_custom_call.1} parent=47 // pred_check
          %p299 = pneg %p47
        $region50: #{tpu_custom_call.1} parent=47 // pred_check_branch
          %301 = sbr.rel (%p299) target = $region52
        $region51: #{tpu_custom_call.1} parent=47 // pred_region
          %302 = dma.done %s295, 256
        $region52: #{tpu_custom_call.1} parent=47 // pred_fallthru
          _
        // Predicated region
        $region53: #{tpu_custom_call.1} parent=47 // pred_check
          %p303 = pneg %p68
        $region54: #{tpu_custom_call.1} parent=47 // pred_check_branch
          %305 = sbr.rel (%p303) target = $region56
        $region55: #{tpu_custom_call.1} parent=47 // pred_region
          %306 = dma.done [#allocation8], 3072
        $region56: #{tpu_custom_call.1} parent=47 // pred_fallthru
          _
        // Predicated region
        $region57: #{tpu_custom_call.1} parent=47 // pred_check
          %p307 = pneg %p110
        $region58: #{tpu_custom_call.1} parent=47 // pred_check_branch
          %309 = sbr.rel (%p307) target = $region60
        $region59: #{tpu_custom_call.1} parent=47 // pred_region
          %310 = dma.done [#allocation8], 6144
        $region60: #{tpu_custom_call.1} parent=47 // pred_fallthru
          _
        // Predicated region
        $region61: #{tpu_custom_call.1} parent=47 // pred_check
          %p311 = pneg %p152
        $region62: #{tpu_custom_call.1} parent=47 // pred_check_branch
          %313 = sbr.rel (%p311) target = $region64
        $region63: #{tpu_custom_call.1} parent=47 // pred_region
          %314 = dma.done [#allocation11], 1024
        $region64: #{tpu_custom_call.1} parent=47 // pred_fallthru
          _
        %s315 = sand.u32 %s34, 1
        %s316 = scalar_lea.sflag [#allocation5], %s315
        %s317 = sand.u32 %s34, 1
        %s318 = smul.addr %s317, 16
        %s319 = scalar_lea.vmem [#allocation4], %s318
        %p320 = pneg %p47
        %p321 = pneg %p44
        %p322 = pneg %p68
        %p323 = pneg %p65
        %p324 = pneg %p89
        %p325 = pneg %p86
        %p326 = pneg %p110
        %p327 = pneg %p107
        %p328 = pneg %p131
        %p329 = pneg %p128
        %p330 = pneg %p152
        %p331 = pneg %p149
        %p332 = pneg %p173
        %p333 = pneg %p170
        %p334 = pneg %p199
        %p335 = pneg %p196
        %s336 = sand.u32 %s186, 1
        %s337 = scalar_lea.sflag [#allocation6], %s336
        %s338 = sand.u32 %s186, 1
        %s339 = smul.addr %s338, 16
        %s340 = scalar_lea.vmem [#allocation12], %s339
        %v341 = vld [vmem:[%s298] sm:$0xff]
        %v342 = vld [vmem:[%s298 + $0x8] sm:$0xff]
        %vm343 = vcmask 516096
        %344 = vst.msk [vmem:[#allocation2] sm:$0x1] %vm343, 0.0
        %345 = vst.msk [vmem:[#allocation2 + $0x11] sm:$0x1] %vm343, 0.0
        %vm346 = vcmask 523264
        %347 = vst.msk [vmem:[#allocation2 + $0x1] sm:$0xff] %vm346, %v341
        %348 = vst.msk [vmem:[#allocation2 + $0x9] sm:$0xff] %vm346, %v342
        %v349 = vld [vmem:[#allocation2] sm:$0xff]
        %v350 = vld [vmem:[#allocation2 + $0x8] sm:$0xff]
        %v351 = vld [vmem:[#allocation7] sm:$0xff]
        %v352 = vld [vmem:[#allocation7 + $0x8] sm:$0xff]
        %v353 = vld [vmem:[#allocation7 + $0x10] sm:$0xff]
        %v354 = vld [vmem:[#allocation7 + $0x18] sm:$0xff]
        %v355 = vld [vmem:[#allocation7 + $0x20] sm:$0xff]
        %v356 = vld [vmem:[#allocation7 + $0x28] sm:$0xff]
        %v357 = vld [vmem:[#allocation7 + $0x30] sm:$0xff]
        %v358 = vld [vmem:[#allocation7 + $0x38] sm:$0xff]
        %s359 = scalar_lea.vmem [#allocation7], 64
        %v360 = vld [vmem:[%s359] sm:$0xff]
        %v361 = vld [vmem:[%s359 + $0x8] sm:$0xff]
        %v362 = vld [vmem:[%s359 + $0x10] sm:$0xff]
        %v363 = vld [vmem:[%s359 + $0x18] sm:$0xff]
        %v364 = vld [vmem:[%s359 + $0x20] sm:$0xff]
        %v365 = vld [vmem:[%s359 + $0x28] sm:$0xff]
        %v366 = vld [vmem:[%s359 + $0x30] sm:$0xff]
        %v367 = vld [vmem:[%s359 + $0x38] sm:$0xff]
        %v369 = vsel %vm346, %v341, 0
        %v372 = vsel %vm346, %v342, 0
        %374 = vmatprep.subr.mxu0 0.0
        %375 = vmatpush1.msra.mxu0 %v360
        %376 = vmatprep.subr.mxu0 0.0
        %377 = vmatpush1.msra.mxu0 %v361
        %378 = vmatprep.subr.mxu0 0.0
        %379 = vmatpush1.msra.mxu0 %v362
        %380 = vmatprep.subr.mxu0 0.0
        %381 = vmatpush1.msra.mxu0 %v363
        %382 = vmatprep.subr.mxu0 0.0
        %383 = vmatpush1.msra.mxu0 %v364
        %384 = vmatprep.subr.mxu0 0.0
        %385 = vmatpush1.msra.mxu0 %v365
        %386 = vmatprep.subr.mxu0 0.0
        %387 = vmatpush1.msra.mxu0 %v366
        %388 = vmatprep.subr.mxu0 0.0
        %389 = vmatpush1.msra.mxu0 %v367
        %390 = vmatprep.subr.mxu0 0.0
        %391 = vmatpush1.msra.mxu0 0.0
        %392 = vmatprep.subr.mxu0 0.0
        %393 = vmatpush1.msra.mxu0 0.0
        %394 = vmatprep.subr.mxu0 0.0
        %395 = vmatpush1.msra.mxu0 0.0
        %396 = vmatprep.subr.mxu0 0.0
        %397 = vmatpush1.msra.mxu0 0.0
        %398 = vmatprep.subr.mxu0 0.0
        %399 = vmatpush1.msra.mxu0 0.0
        %400 = vmatprep.subr.mxu0 0.0
        %401 = vmatpush1.msra.mxu0 0.0
        %402 = vmatprep.subr.mxu0 0.0
        %403 = vmatpush1.msra.mxu0 0.0
        %404 = vmatprep.subr.mxu0 0.0
        %405 = vmatpush1.msra.mxu0 0.0
        %406 = vmatprep.subr.mxu0 0.0
        %407 = vmatpush1.msra.mxu0 0.0
        %408 = vmatprep.subr.mxu0 0.0
        %409 = vmatpush1.msra.mxu0 0.0
        %410 = vmatprep.subr.mxu0 0.0
        %411 = vmatpush1.msra.mxu0 0.0
        %412 = vmatprep.subr.mxu0 0.0
        %413 = vmatpush1.msra.mxu0 0.0
        %414 = vmatprep.subr.mxu0 0.0
        %415 = vmatpush1.msra.mxu0 0.0
        %416 = vmatprep.subr.mxu0 0.0
        %417 = vmatpush1.msra.mxu0 0.0
        %418 = vmatprep.subr.mxu0 0.0
        %419 = vmatpush1.msra.mxu0 0.0
        %420 = vmatprep.subr.mxu0 0.0
        %421 = vmatpush1.msra.mxu0 0.0
        %422 = vmatprep.subr.mxu0 0.0
        %423 = vmatpush1.msra.mxu0 0.0
        %424 = vmatprep.subr.mxu0 0.0
        %425 = vmatpush1.msra.mxu0 0.0
        %426 = vmatprep.subr.mxu0 0.0
        %427 = vmatpush1.msra.mxu0 0.0
        %428 = vmatprep.subr.mxu0 0.0
        %429 = vmatpush1.msra.mxu0 0.0
        %430 = vmatprep.subr.mxu0 0.0
        %431 = vmatpush1.msra.mxu0 0.0
        %432 = vmatprep.subr.mxu0 0.0
        %433 = vmatpush1.msra.mxu0 0.0
        %434 = vmatprep.subr.mxu0 0.0
        %435 = vmatpush1.msra.mxu0 0.0
        %436 = vmatprep.subr.mxu0 0.0
        %437 = vmatpush1.msra.mxu0 0.0
        %438 = vmatprep.mubr.f32.mxu0 0.0
        %439 = vmatmul.mubr.f32.gmra.mrb[0].mxu0 %v369
        %v440 = vpop.f32.mrb[0].mxu0
        %v441 = vadd.f32 0.0, %v440
        %v442 = vpop.f32.mrb[0].mxu0
        %443 = vmatprep.mubr.f32.mxu0 0.0
        %444 = vmatmul.mubr.f32.gmra.mrb[0].mxu0 %v372
        %v445 = vpop.f32.mrb[0].mxu0
        %v446 = vadd.f32 0.0, %v445
        %v447 = vpop.f32.mrb[0].mxu0
        %448 = vdwg.mxu0
        %v450 = vsel %vm346, %v349, 0
        %v453 = vsel %vm346, %v350, 0
        %455 = vmatprep.subr.mxu0 0.0
        %456 = vmatpush1.msra.mxu0 %v351
        %457 = vmatprep.subr.mxu0 0.0
        %458 = vmatpush1.msra.mxu0 %v352
        %459 = vmatprep.subr.mxu0 0.0
        %460 = vmatpush1.msra.mxu0 %v353
        %461 = vmatprep.subr.mxu0 0.0
        %462 = vmatpush1.msra.mxu0 %v354
        %463 = vmatprep.subr.mxu0 0.0
        %464 = vmatpush1.msra.mxu0 %v355
        %465 = vmatprep.subr.mxu0 0.0
        %466 = vmatpush1.msra.mxu0 %v356
        %467 = vmatprep.subr.mxu0 0.0
        %468 = vmatpush1.msra.mxu0 %v357
        %469 = vmatprep.subr.mxu0 0.0
        %470 = vmatpush1.msra.mxu0 %v358
        %471 = vmatprep.subr.mxu0 0.0
        %472 = vmatpush1.msra.mxu0 0.0
        %473 = vmatprep.subr.mxu0 0.0
        %474 = vmatpush1.msra.mxu0 0.0
        %475 = vmatprep.subr.mxu0 0.0
        %476 = vmatpush1.msra.mxu0 0.0
        %477 = vmatprep.subr.mxu0 0.0
        %478 = vmatpush1.msra.mxu0 0.0
        %479 = vmatprep.subr.mxu0 0.0
        %480 = vmatpush1.msra.mxu0 0.0
        %481 = vmatprep.subr.mxu0 0.0
        %482 = vmatpush1.msra.mxu0 0.0
        %483 = vmatprep.subr.mxu0 0.0
        %484 = vmatpush1.msra.mxu0 0.0
        %485 = vmatprep.subr.mxu0 0.0
        %486 = vmatpush1.msra.mxu0 0.0
        %487 = vmatprep.subr.mxu0 0.0
        %488 = vmatpush1.msra.mxu0 0.0
        %489 = vmatprep.subr.mxu0 0.0
        %490 = vmatpush1.msra.mxu0 0.0
        %491 = vmatprep.subr.mxu0 0.0
        %492 = vmatpush1.msra.mxu0 0.0
        %493 = vmatprep.subr.mxu0 0.0
        %494 = vmatpush1.msra.mxu0 0.0
        %495 = vmatprep.subr.mxu0 0.0
        %496 = vmatpush1.msra.mxu0 0.0
        %497 = vmatprep.subr.mxu0 0.0
        %498 = vmatpush1.msra.mxu0 0.0
        %499 = vmatprep.subr.mxu0 0.0
        %500 = vmatpush1.msra.mxu0 0.0
        %501 = vmatprep.subr.mxu0 0.0
        %502 = vmatpush1.msra.mxu0 0.0
        %503 = vmatprep.subr.mxu0 0.0
        %504 = vmatpush1.msra.mxu0 0.0
        %505 = vmatprep.subr.mxu0 0.0
        %506 = vmatpush1.msra.mxu0 0.0
        %507 = vmatprep.subr.mxu0 0.0
        %508 = vmatpush1.msra.mxu0 0.0
        %509 = vmatprep.subr.mxu0 0.0
        %510 = vmatpush1.msra.mxu0 0.0
        %511 = vmatprep.subr.mxu0 0.0
        %512 = vmatpush1.msra.mxu0 0.0
        %513 = vmatprep.subr.mxu0 0.0
        %514 = vmatpush1.msra.mxu0 0.0
        %515 = vmatprep.subr.mxu0 0.0
        %516 = vmatpush1.msra.mxu0 0.0
        %517 = vmatprep.subr.mxu0 0.0
        %518 = vmatpush1.msra.mxu0 0.0
        %519 = vmatprep.mubr.f32.mxu0 0.0
        %520 = vmatmul.mubr.f32.gmra.mrb[0].mxu0 %v450
        %v521 = vpop.f32.mrb[0].mxu0
        %v522 = vadd.f32 %v441, %v521
        %v523 = vpop.f32.mrb[0].mxu0
        %524 = vmatprep.mubr.f32.mxu0 0.0
        %525 = vmatmul.mubr.f32.gmra.mrb[0].mxu0 %v453
        %v526 = vpop.f32.mrb[0].mxu0
        %v527 = vadd.f32 %v446, %v526
        %v528 = vpop.f32.mrb[0].mxu0
        %529 = vdwg.mxu0
        %v530 = vld [vmem:[#allocation2 + $0x2] sm:$0xff]
        %v531 = vld [vmem:[#allocation2 + $0xa] sm:$0xff]
        %s532 = scalar_lea.vmem [#allocation7], 128
        %v533 = vld [vmem:[%s532] sm:$0xff]
        %v534 = vld [vmem:[%s532 + $0x8] sm:$0xff]
        %v535 = vld [vmem:[%s532 + $0x10] sm:$0xff]
        %v536 = vld [vmem:[%s532 + $0x18] sm:$0xff]
        %v537 = vld [vmem:[%s532 + $0x20] sm:$0xff]
        %v538 = vld [vmem:[%s532 + $0x28] sm:$0xff]
        %v539 = vld [vmem:[%s532 + $0x30] sm:$0xff]
        %v540 = vld [vmem:[%s532 + $0x38] sm:$0xff]
        %v542 = vsel %vm346, %v530, 0
        %v545 = vsel %vm346, %v531, 0
        %547 = vmatprep.subr.mxu0 0.0
        %548 = vmatpush1.msra.mxu0 %v533
        %549 = vmatprep.subr.mxu0 0.0
        %550 = vmatpush1.msra.mxu0 %v534
        %551 = vmatprep.subr.mxu0 0.0
        %552 = vmatpush1.msra.mxu0 %v535
        %553 = vmatprep.subr.mxu0 0.0
        %554 = vmatpush1.msra.mxu0 %v536
        %555 = vmatprep.subr.mxu0 0.0
        %556 = vmatpush1.msra.mxu0 %v537
        %557 = vmatprep.subr.mxu0 0.0
        %558 = vmatpush1.msra.mxu0 %v538
        %559 = vmatprep.subr.mxu0 0.0
        %560 = vmatpush1.msra.mxu0 %v539
        %561 = vmatprep.subr.mxu0 0.0
        %562 = vmatpush1.msra.mxu0 %v540
        %563 = vmatprep.subr.mxu0 0.0
        %564 = vmatpush1.msra.mxu0 0.0
        %565 = vmatprep.subr.mxu0 0.0
        %566 = vmatpush1.msra.mxu0 0.0
        %567 = vmatprep.subr.mxu0 0.0
        %568 = vmatpush1.msra.mxu0 0.0
        %569 = vmatprep.subr.mxu0 0.0
        %570 = vmatpush1.msra.mxu0 0.0
        %571 = vmatprep.subr.mxu0 0.0
        %572 = vmatpush1.msra.mxu0 0.0
        %573 = vmatprep.subr.mxu0 0.0
        %574 = vmatpush1.msra.mxu0 0.0
        %575 = vmatprep.subr.mxu0 0.0
        %576 = vmatpush1.msra.mxu0 0.0
        %577 = vmatprep.subr.mxu0 0.0
        %578 = vmatpush1.msra.mxu0 0.0
        %579 = vmatprep.subr.mxu0 0.0
        %580 = vmatpush1.msra.mxu0 0.0
        %581 = vmatprep.subr.mxu0 0.0
        %582 = vmatpush1.msra.mxu0 0.0
        %583 = vmatprep.subr.mxu0 0.0
        %584 = vmatpush1.msra.mxu0 0.0
        %585 = vmatprep.subr.mxu0 0.0
        %586 = vmatpush1.msra.mxu0 0.0
        %587 = vmatprep.subr.mxu0 0.0
        %588 = vmatpush1.msra.mxu0 0.0
        %589 = vmatprep.subr.mxu0 0.0
        %590 = vmatpush1.msra.mxu0 0.0
        %591 = vmatprep.subr.mxu0 0.0
        %592 = vmatpush1.msra.mxu0 0.0
        %593 = vmatprep.subr.mxu0 0.0
        %594 = vmatpush1.msra.mxu0 0.0
        %595 = vmatprep.subr.mxu0 0.0
        %596 = vmatpush1.msra.mxu0 0.0
        %597 = vmatprep.subr.mxu0 0.0
        %598 = vmatpush1.msra.mxu0 0.0
        %599 = vmatprep.subr.mxu0 0.0
        %600 = vmatpush1.msra.mxu0 0.0
        %601 = vmatprep.subr.mxu0 0.0
        %602 = vmatpush1.msra.mxu0 0.0
        %603 = vmatprep.subr.mxu0 0.0
        %604 = vmatpush1.msra.mxu0 0.0
        %605 = vmatprep.subr.mxu0 0.0
        %606 = vmatpush1.msra.mxu0 0.0
        %607 = vmatprep.subr.mxu0 0.0
        %608 = vmatpush1.msra.mxu0 0.0
        %609 = vmatprep.subr.mxu0 0.0
        %610 = vmatpush1.msra.mxu0 0.0
        %611 = vmatprep.mubr.f32.mxu0 0.0
        %612 = vmatmul.mubr.f32.gmra.mrb[0].mxu0 %v542
        %v613 = vpop.f32.mrb[0].mxu0
        %v614 = vadd.f32 0.0, %v613
        %v615 = vpop.f32.mrb[0].mxu0
        %616 = vmatprep.mubr.f32.mxu0 0.0
        %617 = vmatmul.mubr.f32.gmra.mrb[0].mxu0 %v545
        %v618 = vpop.f32.mrb[0].mxu0
        %v619 = vadd.f32 0.0, %v618
        %v620 = vpop.f32.mrb[0].mxu0
        %621 = vdwg.mxu0
        %v622 = vadd.f32 %v522, %v614
        %v623 = vadd.f32 %v527, %v619
        %v624 = vld [vmem:[%s2] sm:$0x1]
        %v626 = vlaneseq
        %v627 = vshrl.u32 %v626, 7
        %v628 = vsub.s32 0, %v627
        %v629 = vrot.slane %v624, %v628
        %v631 = vadd.f32 %v622, %v629
        %v632 = vadd.f32 %v623, %v629
        %v633 = vmax.f32 %v631, 0.0
        %v634 = vmax.f32 %v632, 0.0
        %635 = vst [vmem:[#allocation3] sm:$0x1] 0.0
        %636 = vst [vmem:[#allocation3 + $0x11] sm:$0x1] 0.0
        %637 = vst [vmem:[#allocation3 + $0x1] sm:$0xff] %v633
        %638 = vst [vmem:[#allocation3 + $0x9] sm:$0xff] %v634
        %v639 = vld [vmem:[#allocation3] sm:$0xff]
        %v640 = vld [vmem:[#allocation3 + $0x8] sm:$0xff]
        %v641 = vld [vmem:[#allocation9] sm:$0xff]
        %v642 = vld [vmem:[#allocation9 + $0x8] sm:$0xff]
        %v643 = vld [vmem:[#allocation9 + $0x10] sm:$0xff]
        %v644 = vld [vmem:[#allocation9 + $0x18] sm:$0xff]
        %v645 = vld [vmem:[#allocation9 + $0x20] sm:$0xff]
        %v646 = vld [vmem:[#allocation9 + $0x28] sm:$0xff]
        %v647 = vld [vmem:[#allocation9 + $0x30] sm:$0xff]
        %v648 = vld [vmem:[#allocation9 + $0x38] sm:$0xff]
        %v649 = vld [vmem:[#allocation9 + $0x40] sm:$0xff]
        %v650 = vld [vmem:[#allocation9 + $0x48] sm:$0xff]
        %v651 = vld [vmem:[#allocation9 + $0x50] sm:$0xff]
        %v652 = vld [vmem:[#allocation9 + $0x58] sm:$0xff]
        %v653 = vld [vmem:[#allocation9 + $0x60] sm:$0xff]
        %v654 = vld [vmem:[#allocation9 + $0x68] sm:$0xff]
        %v655 = vld [vmem:[#allocation9 + $0x70] sm:$0xff]
        %v656 = vld [vmem:[#allocation9 + $0x78] sm:$0xff]
        %s657 = scalar_lea.vmem [#allocation9], 128
        %v658 = vld [vmem:[%s657] sm:$0xff]
        %v659 = vld [vmem:[%s657 + $0x8] sm:$0xff]
        %v660 = vld [vmem:[%s657 + $0x10] sm:$0xff]
        %v661 = vld [vmem:[%s657 + $0x18] sm:$0xff]
        %v662 = vld [vmem:[%s657 + $0x20] sm:$0xff]
        %v663 = vld [vmem:[%s657 + $0x28] sm:$0xff]
        %v664 = vld [vmem:[%s657 + $0x30] sm:$0xff]
        %v665 = vld [vmem:[%s657 + $0x38] sm:$0xff]
        %v666 = vld [vmem:[%s657 + $0x40] sm:$0xff]
        %v667 = vld [vmem:[%s657 + $0x48] sm:$0xff]
        %v668 = vld [vmem:[%s657 + $0x50] sm:$0xff]
        %v669 = vld [vmem:[%s657 + $0x58] sm:$0xff]
        %v670 = vld [vmem:[%s657 + $0x60] sm:$0xff]
        %v671 = vld [vmem:[%s657 + $0x68] sm:$0xff]
        %v672 = vld [vmem:[%s657 + $0x70] sm:$0xff]
        %v673 = vld [vmem:[%s657 + $0x78] sm:$0xff]
        %674 = vmatprep.subr.mxu0 0.0
        %675 = vmatpush1.msra.mxu0 %v658
        %676 = vmatprep.subr.mxu0 0.0
        %677 = vmatpush1.msra.mxu0 %v659
        %678 = vmatprep.subr.mxu0 0.0
        %679 = vmatpush1.msra.mxu0 %v660
        %680 = vmatprep.subr.mxu0 0.0
        %681 = vmatpush1.msra.mxu0 %v661
        %682 = vmatprep.subr.mxu0 0.0
        %683 = vmatpush1.msra.mxu0 %v662
        %684 = vmatprep.subr.mxu0 0.0
        %685 = vmatpush1.msra.mxu0 %v663
        %686 = vmatprep.subr.mxu0 0.0
        %687 = vmatpush1.msra.mxu0 %v664
        %688 = vmatprep.subr.mxu0 0.0
        %689 = vmatpush1.msra.mxu0 %v665
        %690 = vmatprep.subr.mxu0 0.0
        %691 = vmatpush1.msra.mxu0 %v666
        %692 = vmatprep.subr.mxu0 0.0
        %693 = vmatpush1.msra.mxu0 %v667
        %694 = vmatprep.subr.mxu0 0.0
        %695 = vmatpush1.msra.mxu0 %v668
        %696 = vmatprep.subr.mxu0 0.0
        %697 = vmatpush1.msra.mxu0 %v669
        %698 = vmatprep.subr.mxu0 0.0
        %699 = vmatpush1.msra.mxu0 %v670
        %700 = vmatprep.subr.mxu0 0.0
        %701 = vmatpush1.msra.mxu0 %v671
        %702 = vmatprep.subr.mxu0 0.0
        %703 = vmatpush1.msra.mxu0 %v672
        %704 = vmatprep.subr.mxu0 0.0
        %705 = vmatpush1.msra.mxu0 %v673
        %706 = vmatprep.subr.mxu0 0.0
        %707 = vmatpush1.msra.mxu0 0.0
        %708 = vmatprep.subr.mxu0 0.0
        %709 = vmatpush1.msra.mxu0 0.0
        %710 = vmatprep.subr.mxu0 0.0
        %711 = vmatpush1.msra.mxu0 0.0
        %712 = vmatprep.subr.mxu0 0.0
        %713 = vmatpush1.msra.mxu0 0.0
        %714 = vmatprep.subr.mxu0 0.0
        %715 = vmatpush1.msra.mxu0 0.0
        %716 = vmatprep.subr.mxu0 0.0
        %717 = vmatpush1.msra.mxu0 0.0
        %718 = vmatprep.subr.mxu0 0.0
        %719 = vmatpush1.msra.mxu0 0.0
        %720 = vmatprep.subr.mxu0 0.0
        %721 = vmatpush1.msra.mxu0 0.0
        %722 = vmatprep.subr.mxu0 0.0
        %723 = vmatpush1.msra.mxu0 0.0
        %724 = vmatprep.subr.mxu0 0.0
        %725 = vmatpush1.msra.mxu0 0.0
        %726 = vmatprep.subr.mxu0 0.0
        %727 = vmatpush1.msra.mxu0 0.0
        %728 = vmatprep.subr.mxu0 0.0
        %729 = vmatpush1.msra.mxu0 0.0
        %730 = vmatprep.subr.mxu0 0.0
        %731 = vmatpush1.msra.mxu0 0.0
        %732 = vmatprep.subr.mxu0 0.0
        %733 = vmatpush1.msra.mxu0 0.0
        %734 = vmatprep.subr.mxu0 0.0
        %735 = vmatpush1.msra.mxu0 0.0
        %736 = vmatprep.subr.mxu0 0.0
        %737 = vmatpush1.msra.mxu0 0.0
        %738 = vmatprep.mubr.f32.mxu0 0.0
        %739 = vmatmul.mubr.f32.gmra.mrb[0].mxu0 %v633
        %v740 = vpop.f32.mrb[0].mxu0
        %v741 = vadd.f32 0.0, %v740
        %v742 = vpop.f32.mrb[0].mxu0
        %743 = vmatprep.mubr.f32.mxu0 0.0
        %744 = vmatmul.mubr.f32.gmra.mrb[0].mxu0 %v634
        %v745 = vpop.f32.mrb[0].mxu0
        %v746 = vadd.f32 0.0, %v745
        %v747 = vpop.f32.mrb[0].mxu0
        %748 = vdwg.mxu0
        %749 = vmatprep.subr.mxu0 0.0
        %750 = vmatpush1.msra.mxu0 %v641
        %751 = vmatprep.subr.mxu0 0.0
        %752 = vmatpush1.msra.mxu0 %v642
        %753 = vmatprep.subr.mxu0 0.0
        %754 = vmatpush1.msra.mxu0 %v643
        %755 = vmatprep.subr.mxu0 0.0
        %756 = vmatpush1.msra.mxu0 %v644
        %757 = vmatprep.subr.mxu0 0.0
        %758 = vmatpush1.msra.mxu0 %v645
        %759 = vmatprep.subr.mxu0 0.0
        %760 = vmatpush1.msra.mxu0 %v646
        %761 = vmatprep.subr.mxu0 0.0
        %762 = vmatpush1.msra.mxu0 %v647
        %763 = vmatprep.subr.mxu0 0.0
        %764 = vmatpush1.msra.mxu0 %v648
        %765 = vmatprep.subr.mxu0 0.0
        %766 = vmatpush1.msra.mxu0 %v649
        %767 = vmatprep.subr.mxu0 0.0
        %768 = vmatpush1.msra.mxu0 %v650
        %769 = vmatprep.subr.mxu0 0.0
        %770 = vmatpush1.msra.mxu0 %v651
        %771 = vmatprep.subr.mxu0 0.0
        %772 = vmatpush1.msra.mxu0 %v652
        %773 = vmatprep.subr.mxu0 0.0
        %774 = vmatpush1.msra.mxu0 %v653
        %775 = vmatprep.subr.mxu0 0.0
        %776 = vmatpush1.msra.mxu0 %v654
        %777 = vmatprep.subr.mxu0 0.0
        %778 = vmatpush1.msra.mxu0 %v655
        %779 = vmatprep.subr.mxu0 0.0
        %780 = vmatpush1.msra.mxu0 %v656
        %781 = vmatprep.subr.mxu0 0.0
        %782 = vmatpush1.msra.mxu0 0.0
        %783 = vmatprep.subr.mxu0 0.0
        %784 = vmatpush1.msra.mxu0 0.0
        %785 = vmatprep.subr.mxu0 0.0
        %786 = vmatpush1.msra.mxu0 0.0
        %787 = vmatprep.subr.mxu0 0.0
        %788 = vmatpush1.msra.mxu0 0.0
        %789 = vmatprep.subr.mxu0 0.0
        %790 = vmatpush1.msra.mxu0 0.0
        %791 = vmatprep.subr.mxu0 0.0
        %792 = vmatpush1.msra.mxu0 0.0
        %793 = vmatprep.subr.mxu0 0.0
        %794 = vmatpush1.msra.mxu0 0.0
        %795 = vmatprep.subr.mxu0 0.0
        %796 = vmatpush1.msra.mxu0 0.0
        %797 = vmatprep.subr.mxu0 0.0
        %798 = vmatpush1.msra.mxu0 0.0
        %799 = vmatprep.subr.mxu0 0.0
        %800 = vmatpush1.msra.mxu0 0.0
        %801 = vmatprep.subr.mxu0 0.0
        %802 = vmatpush1.msra.mxu0 0.0
        %803 = vmatprep.subr.mxu0 0.0
        %804 = vmatpush1.msra.mxu0 0.0
        %805 = vmatprep.subr.mxu0 0.0
        %806 = vmatpush1.msra.mxu0 0.0
        %807 = vmatprep.subr.mxu0 0.0
        %808 = vmatpush1.msra.mxu0 0.0
        %809 = vmatprep.subr.mxu0 0.0
        %810 = vmatpush1.msra.mxu0 0.0
        %811 = vmatprep.subr.mxu0 0.0
        %812 = vmatpush1.msra.mxu0 0.0
        %813 = vmatprep.mubr.f32.mxu0 0.0
        %814 = vmatmul.mubr.f32.gmra.mrb[0].mxu0 %v639
        %v815 = vpop.f32.mrb[0].mxu0
        %v816 = vadd.f32 %v741, %v815
        %v817 = vpop.f32.mrb[0].mxu0
        %818 = vmatprep.mubr.f32.mxu0 0.0
        %819 = vmatmul.mubr.f32.gmra.mrb[0].mxu0 %v640
        %v820 = vpop.f32.mrb[0].mxu0
        %v821 = vadd.f32 %v746, %v820
        %v822 = vpop.f32.mrb[0].mxu0
        %823 = vdwg.mxu0
        %v824 = vld [vmem:[#allocation3 + $0x2] sm:$0xff]
        %v825 = vld [vmem:[#allocation3 + $0xa] sm:$0xff]
        %s826 = scalar_lea.vmem [#allocation9], 256
        %v827 = vld [vmem:[%s826] sm:$0xff]
        %v828 = vld [vmem:[%s826 + $0x8] sm:$0xff]
        %v829 = vld [vmem:[%s826 + $0x10] sm:$0xff]
        %v830 = vld [vmem:[%s826 + $0x18] sm:$0xff]
        %v831 = vld [vmem:[%s826 + $0x20] sm:$0xff]
        %v832 = vld [vmem:[%s826 + $0x28] sm:$0xff]
        %v833 = vld [vmem:[%s826 + $0x30] sm:$0xff]
        %v834 = vld [vmem:[%s826 + $0x38] sm:$0xff]
        %v835 = vld [vmem:[%s826 + $0x40] sm:$0xff]
        %v836 = vld [vmem:[%s826 + $0x48] sm:$0xff]
        %v837 = vld [vmem:[%s826 + $0x50] sm:$0xff]
        %v838 = vld [vmem:[%s826 + $0x58] sm:$0xff]
        %v839 = vld [vmem:[%s826 + $0x60] sm:$0xff]
        %v840 = vld [vmem:[%s826 + $0x68] sm:$0xff]
        %v841 = vld [vmem:[%s826 + $0x70] sm:$0xff]
        %v842 = vld [vmem:[%s826 + $0x78] sm:$0xff]
        %843 = vmatprep.subr.mxu0 0.0
        %844 = vmatpush1.msra.mxu0 %v827
        %845 = vmatprep.subr.mxu0 0.0
        %846 = vmatpush1.msra.mxu0 %v828
        %847 = vmatprep.subr.mxu0 0.0
        %848 = vmatpush1.msra.mxu0 %v829
        %849 = vmatprep.subr.mxu0 0.0
        %850 = vmatpush1.msra.mxu0 %v830
        %851 = vmatprep.subr.mxu0 0.0
        %852 = vmatpush1.msra.mxu0 %v831
        %853 = vmatprep.subr.mxu0 0.0
        %854 = vmatpush1.msra.mxu0 %v832
        %855 = vmatprep.subr.mxu0 0.0
        %856 = vmatpush1.msra.mxu0 %v833
        %857 = vmatprep.subr.mxu0 0.0
        %858 = vmatpush1.msra.mxu0 %v834
        %859 = vmatprep.subr.mxu0 0.0
        %860 = vmatpush1.msra.mxu0 %v835
        %861 = vmatprep.subr.mxu0 0.0
        %862 = vmatpush1.msra.mxu0 %v836
        %863 = vmatprep.subr.mxu0 0.0
        %864 = vmatpush1.msra.mxu0 %v837
        %865 = vmatprep.subr.mxu0 0.0
        %866 = vmatpush1.msra.mxu0 %v838
        %867 = vmatprep.subr.mxu0 0.0
        %868 = vmatpush1.msra.mxu0 %v839
        %869 = vmatprep.subr.mxu0 0.0
        %870 = vmatpush1.msra.mxu0 %v840
        %871 = vmatprep.subr.mxu0 0.0
        %872 = vmatpush1.msra.mxu0 %v841
        %873 = vmatprep.subr.mxu0 0.0
        %874 = vmatpush1.msra.mxu0 %v842
        %875 = vmatprep.subr.mxu0 0.0
        %876 = vmatpush1.msra.mxu0 0.0
        %877 = vmatprep.subr.mxu0 0.0
        %878 = vmatpush1.msra.mxu0 0.0
        %879 = vmatprep.subr.mxu0 0.0
        %880 = vmatpush1.msra.mxu0 0.0
        %881 = vmatprep.subr.mxu0 0.0
        %882 = vmatpush1.msra.mxu0 0.0
        %883 = vmatprep.subr.mxu0 0.0
        %884 = vmatpush1.msra.mxu0 0.0
        %885 = vmatprep.subr.mxu0 0.0
        %886 = vmatpush1.msra.mxu0 0.0
        %887 = vmatprep.subr.mxu0 0.0
        %888 = vmatpush1.msra.mxu0 0.0
        %889 = vmatprep.subr.mxu0 0.0
        %890 = vmatpush1.msra.mxu0 0.0
        %891 = vmatprep.subr.mxu0 0.0
        %892 = vmatpush1.msra.mxu0 0.0
        %893 = vmatprep.subr.mxu0 0.0
        %894 = vmatpush1.msra.mxu0 0.0
        %895 = vmatprep.subr.mxu0 0.0
        %896 = vmatpush1.msra.mxu0 0.0
        %897 = vmatprep.subr.mxu0 0.0
        %898 = vmatpush1.msra.mxu0 0.0
        %899 = vmatprep.subr.mxu0 0.0
        %900 = vmatpush1.msra.mxu0 0.0
        %901 = vmatprep.subr.mxu0 0.0
        %902 = vmatpush1.msra.mxu0 0.0
        %903 = vmatprep.subr.mxu0 0.0
        %904 = vmatpush1.msra.mxu0 0.0
        %905 = vmatprep.subr.mxu0 0.0
        %906 = vmatpush1.msra.mxu0 0.0
        %907 = vmatprep.mubr.f32.mxu0 0.0
        %908 = vmatmul.mubr.f32.gmra.mrb[0].mxu0 %v824
        %v909 = vpop.f32.mrb[0].mxu0
        %v910 = vadd.f32 0.0, %v909
        %v911 = vpop.f32.mrb[0].mxu0
        %912 = vmatprep.mubr.f32.mxu0 0.0
        %913 = vmatmul.mubr.f32.gmra.mrb[0].mxu0 %v825
        %v914 = vpop.f32.mrb[0].mxu0
        %v915 = vadd.f32 0.0, %v914
        %v916 = vpop.f32.mrb[0].mxu0
        %917 = vdwg.mxu0
        %v918 = vadd.f32 %v816, %v910
        %v919 = vadd.f32 %v821, %v915
        %v920 = vld [vmem:[%s4] sm:$0x1]
        %v922 = vlaneseq
        %v923 = vshrl.u32 %v922, 7
        %v924 = vsub.s32 0, %v923
        %v925 = vrot.slane %v920, %v924
        %v927 = vadd.f32 %v918, %v925
        %v928 = vadd.f32 %v919, %v925
        %v929 = vld [vmem:[#allocation10] sm:$0xff]
        %v930 = vld [vmem:[#allocation10 + $0x8] sm:$0xff]
        %v931 = vld [vmem:[#allocation10 + $0x10] sm:$0xff]
        %v932 = vld [vmem:[#allocation10 + $0x18] sm:$0xff]
        %v933 = vld [vmem:[#allocation10 + $0x20] sm:$0xff]
        %v934 = vld [vmem:[#allocation10 + $0x28] sm:$0xff]
        %v935 = vld [vmem:[#allocation10 + $0x30] sm:$0xff]
        %v936 = vld [vmem:[#allocation10 + $0x38] sm:$0xff]
        %v937 = vld [vmem:[%s6] sm:$0x1]
        %v939 = vlaneseq
        %v940 = vshrl.u32 %v939, 7
        %v941 = vsub.s32 0, %v940
        %v942 = vrot.slane %v937, %v941
        %944 = vmatprep.subr.mxu0 0.0
        %945 = vmatpush1.msra.mxu0 %v929
        %946 = vmatprep.subr.mxu0 0.0
        %947 = vmatpush1.msra.mxu0 %v930
        %948 = vmatprep.subr.mxu0 0.0
        %949 = vmatpush1.msra.mxu0 %v931
        %950 = vmatprep.subr.mxu0 0.0
        %951 = vmatpush1.msra.mxu0 %v932
        %952 = vmatprep.subr.mxu0 0.0
        %953 = vmatpush1.msra.mxu0 %v933
        %954 = vmatprep.subr.mxu0 0.0
        %955 = vmatpush1.msra.mxu0 %v934
        %956 = vmatprep.subr.mxu0 0.0
        %957 = vmatpush1.msra.mxu0 %v935
        %958 = vmatprep.subr.mxu0 0.0
        %959 = vmatpush1.msra.mxu0 %v936
        %960 = vmatprep.subr.mxu0 0.0
        %961 = vmatpush1.msra.mxu0 0.0
        %962 = vmatprep.subr.mxu0 0.0
        %963 = vmatpush1.msra.mxu0 0.0
        %964 = vmatprep.subr.mxu0 0.0
        %965 = vmatpush1.msra.mxu0 0.0
        %966 = vmatprep.subr.mxu0 0.0
        %967 = vmatpush1.msra.mxu0 0.0
        %968 = vmatprep.subr.mxu0 0.0
        %969 = vmatpush1.msra.mxu0 0.0
        %970 = vmatprep.subr.mxu0 0.0
        %971 = vmatpush1.msra.mxu0 0.0
        %972 = vmatprep.subr.mxu0 0.0
        %973 = vmatpush1.msra.mxu0 0.0
        %974 = vmatprep.subr.mxu0 0.0
        %975 = vmatpush1.msra.mxu0 0.0
        %976 = vmatprep.subr.mxu0 0.0
        %977 = vmatpush1.msra.mxu0 0.0
        %978 = vmatprep.subr.mxu0 0.0
        %979 = vmatpush1.msra.mxu0 0.0
        %980 = vmatprep.subr.mxu0 0.0
        %981 = vmatpush1.msra.mxu0 0.0
        %982 = vmatprep.subr.mxu0 0.0
        %983 = vmatpush1.msra.mxu0 0.0
        %984 = vmatprep.subr.mxu0 0.0
        %985 = vmatpush1.msra.mxu0 0.0
        %986 = vmatprep.subr.mxu0 0.0
        %987 = vmatpush1.msra.mxu0 0.0
        %988 = vmatprep.subr.mxu0 0.0
        %989 = vmatpush1.msra.mxu0 0.0
        %990 = vmatprep.subr.mxu0 0.0
        %991 = vmatpush1.msra.mxu0 0.0
        %992 = vmatprep.subr.mxu0 0.0
        %993 = vmatpush1.msra.mxu0 0.0
        %994 = vmatprep.subr.mxu0 0.0
        %995 = vmatpush1.msra.mxu0 0.0
        %996 = vmatprep.subr.mxu0 0.0
        %997 = vmatpush1.msra.mxu0 0.0
        %998 = vmatprep.subr.mxu0 0.0
        %999 = vmatpush1.msra.mxu0 0.0
        %1000 = vmatprep.subr.mxu0 0.0
        %1001 = vmatpush1.msra.mxu0 0.0
        %1002 = vmatprep.subr.mxu0 0.0
        %1003 = vmatpush1.msra.mxu0 0.0
        %1004 = vmatprep.subr.mxu0 0.0
        %1005 = vmatpush1.msra.mxu0 0.0
        %1006 = vmatprep.subr.mxu0 0.0
        %1007 = vmatpush1.msra.mxu0 0.0
        %1008 = vmatprep.mubr.f32.mxu0 0.0
        %1009 = vmatmul.mubr.f32.gmra.mrb[0].mxu0 %v369
        %v1010 = vpop.f32.mrb[0].mxu0
        %v1011 = vadd.f32 %v942, %v1010
        %v1012 = vpop.f32.mrb[0].mxu0
        %1013 = vmatprep.mubr.f32.mxu0 0.0
        %1014 = vmatmul.mubr.f32.gmra.mrb[0].mxu0 %v372
        %v1015 = vpop.f32.mrb[0].mxu0
        %v1016 = vadd.f32 %v942, %v1015
        %v1017 = vpop.f32.mrb[0].mxu0
        %1018 = vdwg.mxu0
        %v1019 = vadd.f32 %v927, %v1011
        %v1020 = vadd.f32 %v928, %v1016
        %v1021 = vmax.f32 %v1019, 0.0
        %v1022 = vmax.f32 %v1020, 0.0
        %1023 = vst [vmem:[%s340] sm:$0xff] %v1021
        %1024 = vst [vmem:[%s340 + $0x8] sm:$0xff] %v1022
        %s1025 = sand.u32 %s186, 1
        %s1026 = scalar_lea.sflag [#allocation6], %s1025
        %s1027 = sand.u32 %s186, 1
        %s1028 = smul.addr %s1027, 16
        %s1029 = scalar_lea.vmem [#allocation12], %s1028
        // Predicated region
        $region65: #{tpu_custom_call.1} parent=47 // pred_check
          %p1030 = pneg %p196
        $region66: #{tpu_custom_call.1} parent=47 // pred_check_branch
          %1032 = sbr.rel (%p1030) target = $region68
        $region67: #{tpu_custom_call.1} parent=47 // pred_region
          %s1034 = ssub.s32 256, 256
          %1035 = vsyncadd %s1026, %s1034
          %s1036 = smul.addr %s26, 2
          %s1037 = smul.addr %s1036, 128
          %s1038 = scalar_lea.hbm %s7, %s1037
          %s1039 = sshll.u32 %s1029, 4
          %s1040 = int_to_ptr.vmem [resolvable:$true] %s1039
          %1045 = dma.vmem_to_hbm [thread:$0]  %s1040, 256, %s1038, %s1026, 128, 128, 8
        $region68: #{tpu_custom_call.1} parent=47 // pred_fallthru
          _
      $region48: #{tpu_custom_call.1} parent=5 // pred_fallthru
        _
      %p1046 = scmp.le.s32.totalorder 2, %s21
      // Predicated region
      $region69: #{tpu_custom_call.1} parent=5 // pred_check
        %p1047 = pneg %p1046
      $region70: #{tpu_custom_call.1} parent=5 // pred_check_branch
        %1049 = sbr.rel (%p1047) target = $region72
      $region71: #{tpu_custom_call.1} parent=5 // pred_region
        %s1050 = ssub.s32 %s21, 2
        // Predicated region
        $region73: #{tpu_custom_call.1} parent=71 // pred_check
          %p1051 = pneg %p202
        $region74: #{tpu_custom_call.1} parent=71 // pred_check_branch
          %1053 = sbr.rel (%p1051) target = $region76
        $region75: #{tpu_custom_call.1} parent=71 // pred_region
          %s1054 = sand.u32 %s187, 1
          %s1055 = scalar_lea.sflag [#allocation6], %s1054
          %s1056 = sand.u32 %s187, 1
          %s1057 = smul.addr %s1056, 16
          %s1058 = scalar_lea.vmem [#allocation12], %s1057
          %1059 = dma.done %s1055, 256
        $region76: #{tpu_custom_call.1} parent=71 // pred_fallthru
          _
      $region72: #{tpu_custom_call.1} parent=5 // pred_fallthru
        _
    $region6: #{tpu_custom_call.1} parent=1 // loop_footer
      %s25 = sadd.s32 1, %s21
    $region7: #{tpu_custom_call.1} parent=1 // loop_footer_branch
      %20 = sbr.rel target = $region3
    $region8: #{tpu_custom_call.1} parent=1 // loop_exit
      _
    %1060 = vsyncpa [#allocation5], 1
    %s1061 = scalar_lea.sflag [#allocation5], 1
    %1062 = vsyncpa %s1061, 1
    %1063 = vsyncpa [#allocation8], 1
    %1064 = vsyncpa [#allocation11], 1
    %1065 = vsyncpa [#allocation6], 1
    %s1066 = scalar_lea.sflag [#allocation6], 1
    %1067 = vsyncpa %s1066, 1

</llo_original>
